<compile_context>
chip_gen: v7x
topology: tpu7x:2x2x1
jax: 0.10.0
libtpu: 0.0.40
codegen_flags: <defaults>
</compile_context>

<pallas_src>
import jax
import jax.numpy as jnp
from jax.experimental import pallas as pl
from jax.experimental.pallas import tpu as pltpu

# Per-array tile target. 3 arrays x 2 pipeline buffers x 4 MiB = 24 MiB,
# covered by the explicit 40 MiB scoped-VMEM budget below (leaves headroom on
# v7x's 64 MiB physical VMEM; trivially fits v5e/v6e's 128 MiB).
_TILE_BYTES_TARGET = 4 << 20
_VMEM_LIMIT_BYTES = 40 << 20
# Below this, fixed kernel-launch + pipeline overhead swamps the HBM transfer.
_FAST_PATH_MAX_BYTES = 1 << 20


def _make_fma_kernel(x_val):
    """Kernel factory: bakes the module parameter `x` in as a constant."""

    def kernel(a_ref, b_ref, o_ref):
        o_ref[...] = a_ref[...] * b_ref[...] + x_val

    return kernel


def bar_forward(a, b, x_scalar, *, force_pallas=False):
    """Computes a * b + x elementwise (Pallas TPU kernel for the bulk case).

    a, b: arrays of identical shape/dtype (e.g. NCHW [N, C, H, W]).
    x_scalar: Python scalar, the module's stored `self.x` (build-time constant).
    force_pallas: test hook to exercise the kernel even on tiny inputs.
    """
    assert a.shape == b.shape and a.dtype == b.dtype
    orig_shape = a.shape
    n_elem = a.size
    itemsize = jnp.dtype(a.dtype).itemsize
    total_bytes = n_elem * itemsize

    # Fast path 1: tiny inputs -> fused XLA elementwise; kernel dispatch and
    # pipeline prologue/epilogue (~0.35 us/step + custom-call cost) dominate.
    if not force_pallas and total_bytes < _FAST_PATH_MAX_BYTES:
        return a * b + x_scalar

    # Lane-dense slab width: widest multiple of 128 dividing n_elem so the
    # reshape is metadata-only (no HBM copy).
    lanes = None
    for cand in (4096, 2048, 1024, 512, 256, 128):
        if n_elem % cand == 0:
            lanes = cand
            break

    # Fast path 2: ragged sizes. Padding both inputs + unpadding the output
    # would add ~2 extra full HBM passes on a purely bandwidth-bound op; the
    # fused XLA FMA is already roofline-level there.
    if lanes is None:
        return a * b + x_scalar

    a2 = a.reshape(-1, lanes)  # metadata-only
    b2 = b.reshape(-1, lanes)
    rows = a2.shape[0]

    # Minimum sublane granularity: 8 (f32), 16 (bf16/f16), 32 (int8/fp8).
    min_sub = max(8, 32 // itemsize)

    if rows < min_sub:
        tile_rows = rows  # full-extent block: exempt from the (8,128) rule
    else:
        target = max(min_sub, _TILE_BYTES_TARGET // (lanes * itemsize))
        # Cap at rows // 2: two grid steps are enough to overlap output
        # writeback with the next input DMA. The grid is a serial loop on
        # single-TC v5e/v6e (extra steps = pure per-step overhead), and >= 2
        # steps still feeds both v7x TensorCores.
        target = min(target, max(min_sub, rows // 2))
        tile_rows = max(min_sub, (target // min_sub) * min_sub)
        # v7x has 2 TensorCores: best-effort round to an even grid-step count
        # to avoid a one-step load imbalance under dimension_semantics=parallel.
        steps = pl.cdiv(rows, tile_rows)
        if steps > 1 and steps % 2 == 1:
            cand_rows = pl.cdiv(rows, steps + 1)
            cand_rows = max(min_sub, ((cand_rows + min_sub - 1) // min_sub) * min_sub)
            if pl.cdiv(rows, cand_rows) % 2 == 0:
                tile_rows = cand_rows

    grid = (pl.cdiv(rows, tile_rows),)

    out2 = pl.pallas_call(
        _make_fma_kernel(x_scalar),
        out_shape=jax.ShapeDtypeStruct((rows, lanes), a.dtype),
        grid=grid,
        in_specs=[
            pl.BlockSpec((tile_rows, lanes), lambda i: (i, 0)),  # a tile
            pl.BlockSpec((tile_rows, lanes), lambda i: (i, 0)),  # b tile
        ],
        out_specs=pl.BlockSpec((tile_rows, lanes), lambda i: (i, 0)),
        compiler_params=pltpu.CompilerParams(
            dimension_semantics=("parallel",),
            vmem_limit_bytes=_VMEM_LIMIT_BYTES,
        ),
        cost_estimate=pl.CostEstimate(
            flops=2 * n_elem,
            transcendentals=0,
            bytes_accessed=3 * n_elem * itemsize,
        ),
    )(a2, b2)

    return out2.reshape(orig_shape)


if __name__ == "__main__":
    key = jax.random.PRNGKey(0)
    k_a, k_b, k_c, k_d, k_e, k_f = jax.random.split(key, 6)

    # Deterministic module parameter self.x (constructed at __init__ time).
    x = 3.0

    # 1) Small NCHW shape consistent with the module -- exercises both the
    #    fast path (default) and the Pallas kernel (force_pallas=True).
    shape = (2, 4, 16, 16)
    a = jax.random.normal(k_a, shape, dtype=jnp.float32)
    b = jax.random.normal(k_b, shape, dtype=jnp.float32)
    expected = a * b + x

    out_fast = bar_forward(a, b, x)
    jax.block_until_ready(out_fast)
    assert out_fast.shape == expected.shape
    assert jnp.allclose(out_fast, expected, atol=1e-6, rtol=1e-6)

    out_kernel = bar_forward(a, b, x, force_pallas=True)
    jax.block_until_ready(out_kernel)
    assert jnp.allclose(out_kernel, expected, atol=1e-6, rtol=1e-6)

    # 2) Larger shape (2 MiB) -- exercises the multi-block pipelined path.
    shape2 = (2, 16, 128, 128)
    a2 = jax.random.normal(k_c, shape2, dtype=jnp.float32)
    b2 = jax.random.normal(k_d, shape2, dtype=jnp.float32)
    out2 = bar_forward(a2, b2, x)
    jax.block_until_ready(out2)
    assert jnp.allclose(out2, a2 * b2 + x, atol=1e-6, rtol=1e-6)

    # 3) Ragged (non-128-divisible) large-ish shape -- exercises the fused-XLA
    #    fallback (no pad/unpad HBM passes).
    shape3 = (257, 1031)
    a3 = jax.random.normal(k_e, shape3, dtype=jnp.float32)
    b3 = jax.random.normal(k_f, shape3, dtype=jnp.float32)
    out3 = bar_forward(a3, b3, x)
    jax.block_until_ready(out3)
    assert jnp.allclose(out3, a3 * b3 + x, atol=1e-6, rtol=1e-6)

    print("KERNEL_OK")
</pallas_src>

<mosaic_0001>
module attributes {stable_mosaic.version = 11 : i64} {
  func.func @kernel(%arg0: i32, %arg1: memref<1x2048xf32, #tpu.memory_space<vmem>>, %arg2: memref<1x2048xf32, #tpu.memory_space<vmem>>, %arg3: memref<1x2048xf32, #tpu.memory_space<vmem>>) attributes {dimension_semantics = [#tpu.dimension_semantics<parallel>], iteration_bounds = array<i64: 1>, scalar_prefetch = 0 : i64, scratch_operands = 0 : i64, tpu.core_type = #tpu.core_type<tc>, window_params = [{transform_indices = @transform_0, window_bounds = array<i64: 1, 2048>}, {transform_indices = @transform_1, window_bounds = array<i64: 1, 2048>}, {transform_indices = @transform_2, window_bounds = array<i64: 1, 2048>}]} {
    %c0 = arith.constant 0 : index
    %c0_0 = arith.constant 0 : index
    %0 = vector.load %arg1[%c0, %c0_0] : memref<1x2048xf32, #tpu.memory_space<vmem>>, vector<1x2048xf32>
    %c0_1 = arith.constant 0 : index
    %c0_2 = arith.constant 0 : index
    %1 = vector.load %arg2[%c0_1, %c0_2] : memref<1x2048xf32, #tpu.memory_space<vmem>>, vector<1x2048xf32>
    %2 = arith.mulf %0, %1 : vector<1x2048xf32>
    %cst = arith.constant 3.000000e+00 : f32
    %3 = vector.broadcast %cst : f32 to vector<1x2048xf32>
    %4 = arith.addf %2, %3 : vector<1x2048xf32>
    %c0_3 = arith.constant 0 : index
    %c0_4 = arith.constant 0 : index
    %5 = vector.load %arg3[%c0_3, %c0_4] : memref<1x2048xf32, #tpu.memory_space<vmem>>, vector<1x2048xf32>
    tpu.vector_store %arg3[%c0_3, %c0_4], %4 {strides = array<i32>} : memref<1x2048xf32, #tpu.memory_space<vmem>>, vector<1x2048xf32>,
    return
  }
  func.func @transform_0(%arg0: i32) -> (i32, i32) {
    %c0_i32 = arith.constant 0 : i32
    %c0_i32_0 = arith.constant 0 : i32
    return %arg0, %c0_i32 : i32, i32
  }
  func.func @transform_1(%arg0: i32) -> (i32, i32) {
    %c0_i32 = arith.constant 0 : i32
    %c0_i32_0 = arith.constant 0 : i32
    return %arg0, %c0_i32 : i32, i32
  }
  func.func @transform_2(%arg0: i32) -> (i32, i32) {
    %c0_i32 = arith.constant 0 : i32
    %c0_i32_0 = arith.constant 0 : i32
    return %arg0, %c0_i32 : i32, i32
  }
}

</mosaic_0001>

<llo_original>
// kernel: tpu_custom_call.1
$region0: #{tpu_custom_call.1}
  #allocation0 [shape = 'u32[]', space=smem, size = 0x4, offset = 0x4, fixed_abs, tag = 'smem constant byte address 0x4 - core index']
  #allocation1 [shape = 'u32[144,128]{1,0:T(1,128)}', space=vmem, size = 0x12000, scoped, tag = 'internal scratch']
  %s0 = inlined_call_operand.hbm [shape: f32[1,2048], index: 0, kind: input, shape index: {}]
  %s1 = inlined_call_operand.hbm [shape: f32[1,2048], index: 1, kind: input, shape index: {}]
  %s2 = inlined_call_operand.hbm [shape: f32[1,2048], index: 2, kind: output, shape index: {}]
  %s3 = sld [smem:[#allocation0]]
  $region26: #{tpu_custom_call.1} parent=0
    _
  %s5 = ssub.s32 1, %s3
  %s6 = scalar_select 0, %s5, %s3
  $region1: #{tpu_custom_call.1} parent=0
    #allocation2 [shape = 'u8[8192]{0}', space=vmem, size = 0x2000, scoped, tag = 'input window, operand 0, single buffered']
    #allocation3 [shape = 's32[1]{0}', space=sflag, size = 0x4, scoped, tag = 'scoped memory for tpu_custom_call.1']
    #allocation4 [shape = 's32[1]{0}', space=sflag, size = 0x4, scoped, tag = 'scoped memory for tpu_custom_call.1']
    #allocation5 [shape = 'u8[8192]{0}', space=vmem, size = 0x2000, scoped, tag = 'input window, operand 1, single buffered']
    #allocation6 [shape = 's32[1]{0}', space=sflag, size = 0x4, scoped, tag = 'scoped memory for tpu_custom_call.1']
    #allocation7 [shape = 'u8[8192]{0}', space=vmem, size = 0x2000, scoped, tag = 'output window, operand 0, single buffered']
    %7 = vsyncpa [#allocation3], 0
    %8 = vsyncpa [#allocation6], 0
    %9 = vsyncpa [#allocation4], 0
    // Predicated region
    $region2: #{tpu_custom_call.1} parent=1 // pred_check
      _
    $region3: #{tpu_custom_call.1} parent=1 // pred_check_branch
      %11 = sbr.rel (0) target = $region5
    $region4: #{tpu_custom_call.1} parent=1 // pred_region
      %s13 = ssub.s32 256, 256
      %14 = vsyncadd [#allocation3], %s13
      %s16 = sshll.u32 [#allocation2], 4
      %s17 = int_to_ptr.vmem [resolvable:$true] %s16
      %19 = dma.hbm_to_vmem [thread:$0]  %s0, 256, %s17, [#allocation3]
    $region5: #{tpu_custom_call.1} parent=1 // pred_fallthru
      _
    // Predicated region
    $region6: #{tpu_custom_call.1} parent=1 // pred_check
      _
    $region7: #{tpu_custom_call.1} parent=1 // pred_check_branch
      %21 = sbr.rel (0) target = $region9
    $region8: #{tpu_custom_call.1} parent=1 // pred_region
      %s23 = ssub.s32 256, 256
      %24 = vsyncadd [#allocation6], %s23
      %s26 = sshll.u32 [#allocation5], 4
      %s27 = int_to_ptr.vmem [resolvable:$true] %s26
      %29 = dma.hbm_to_vmem [thread:$0]  %s1, 256, %s27, [#allocation6]
    $region9: #{tpu_custom_call.1} parent=1 // pred_fallthru
      _
    // Predicated region
    $region10: #{tpu_custom_call.1} parent=1 // pred_check
      _
    $region11: #{tpu_custom_call.1} parent=1 // pred_check_branch
      %31 = sbr.rel (0) target = $region13
    $region12: #{tpu_custom_call.1} parent=1 // pred_region
      %32 = dma.done [#allocation3], 256
    $region13: #{tpu_custom_call.1} parent=1 // pred_fallthru
      _
    // Predicated region
    $region14: #{tpu_custom_call.1} parent=1 // pred_check
      _
    $region15: #{tpu_custom_call.1} parent=1 // pred_check_branch
      %34 = sbr.rel (0) target = $region17
    $region16: #{tpu_custom_call.1} parent=1 // pred_region
      %35 = dma.done [#allocation6], 256
    $region17: #{tpu_custom_call.1} parent=1 // pred_fallthru
      _
    %v36 = vld [vmem:[#allocation2] sm:$0xff]
    %v37 = vld [vmem:[#allocation2 + $0x8] sm:$0xff]
    %v38 = vld [vmem:[#allocation5] sm:$0xff]
    %v39 = vld [vmem:[#allocation5 + $0x8] sm:$0xff]
    %v40 = vmul.f32 %v36, %v38
    %v41 = vmul.f32 %v37, %v39
    %v42 = vadd.f32 %v40, 3.0
    %v43 = vadd.f32 %v41, 3.0
    %44 = vst [vmem:[#allocation7] sm:$0xff] %v42
    %45 = vst [vmem:[#allocation7 + $0x8] sm:$0xff] %v43
    // Predicated region
    $region18: #{tpu_custom_call.1} parent=1 // pred_check
      _
    $region19: #{tpu_custom_call.1} parent=1 // pred_check_branch
      %47 = sbr.rel (0) target = $region21
    $region20: #{tpu_custom_call.1} parent=1 // pred_region
      %s49 = ssub.s32 256, 256
      %50 = vsyncadd [#allocation4], %s49
      %s52 = sshll.u32 [#allocation7], 4
      %s53 = int_to_ptr.vmem [resolvable:$true] %s52
      %55 = dma.vmem_to_hbm [thread:$0]  %s53, 256, %s2, [#allocation4]
    $region21: #{tpu_custom_call.1} parent=1 // pred_fallthru
      _
    // Predicated region
    $region22: #{tpu_custom_call.1} parent=1 // pred_check
      _
    $region23: #{tpu_custom_call.1} parent=1 // pred_check_branch
      %57 = sbr.rel (0) target = $region25
    $region24: #{tpu_custom_call.1} parent=1 // pred_region
      %58 = dma.done [#allocation4], 256
    $region25: #{tpu_custom_call.1} parent=1 // pred_fallthru
      _
    %59 = vsyncpa [#allocation3], 1
    %60 = vsyncpa [#allocation6], 1
    %61 = vsyncpa [#allocation4], 1

</llo_original>
